<compile_context>
chip_gen: v5e
topology: v5e:2x2
jax: 0.10.0
libtpu: 0.0.40
codegen_flags: <defaults>
</compile_context>

<pallas_src>
import functools

import jax
import jax.numpy as jnp
from jax.experimental import pallas as pl
from jax.experimental.pallas import tpu as pltpu

LANES = 128
SUBLANES = 8
CHUNK_R = 512                 # compute sub-chunk: (512, 128) f32 intermediates
BLOCK_IN_BYTES = 8 << 20      # combined input bytes moved per grid step (per buffer)
VMEM_LIMIT_BYTES = 40 << 20   # < 64 MiB physical on v7x; generous on v5e/v6e


def _num_tensorcores():
    """2 on v7x-like chips (2 TensorCores/chip), else 1 (v5e/v6e)."""
    try:
        kind = jax.devices()[0].device_kind.lower().replace(" ", "")
    except Exception:
        return 1
    return 2 if ("v7" in kind or "tpu7" in kind) else 1


def _focal_kernel(pred_ref, tgt_ref, out_ref, *, alpha, gamma, rows, block_r,
                  chunk_r, n_chunks, blocks_per_core, needs_edge):
    c = pl.program_id(0)
    i = pl.program_id(1)

    # Per-core resident (8, 128) partial-sum accumulator.
    @pl.when(i == 0)
    def _init():
        out_ref[...] = jnp.zeros_like(out_ref)

    row0 = (c * blocks_per_core + i) * block_r

    # Constants folded at trace time (VPU op trimming).
    a0 = 1.0 - float(alpha)            # alpha_factor = a0 + t * a1
    a1 = 2.0 * float(alpha) - 1.0
    g = float(gamma)

    def aligned(off):
        return off if isinstance(off, int) else pl.multiple_of(off, chunk_r)

    def loss_chunk(base):
        """Elementwise focal loss on a (chunk_r, 128) sub-chunk (f32)."""
        p = pred_ref[pl.ds(base, chunk_r), :].astype(jnp.float32)
        t = tgt_ref[pl.ds(base, chunk_r), :].astype(jnp.float32)
        # binary_cross_entropy (reduction='none'); PyTorch clamps logs at -100.
        log_p = jnp.maximum(jnp.log(p), -100.0)
        log_1mp = jnp.maximum(jnp.log(1.0 - p), -100.0)
        # -(t*log_p + (1-t)*log_1mp) == -(log_1mp + t*(log_p - log_1mp))
        bce = -(log_1mp + t * (log_p - log_1mp))
        # 1 - p_t == p + t - 2*p*t
        pt = p * t
        m = (p + t) - (pt + pt)
        af = a0 + t * a1                               # alpha_factor
        if g == 0.0:
            w = af
        else:
            if g.is_integer() and 1.0 <= g <= 8.0:
                mod = m                                # integer gamma -> VPU multiplies
                for _ in range(int(g) - 1):
                    mod = mod * m
            else:
                mod = m ** g                           # EUP pow for non-integer gamma
            w = af * mod
        return w * bce

    def reduce8(x):
        # Fold the chunk into an (8, 128) vreg-group partial sum (VPU adds only).
        return jnp.sum(x.reshape(chunk_r // SUBLANES, SUBLANES, LANES), axis=0)

    zero_acc = jnp.zeros((SUBLANES, LANES), jnp.float32)

    def full_block():
        def body(j, acc):
            return acc + reduce8(loss_chunk(aligned(j * chunk_r)))
        out_ref[...] += jax.lax.fori_loop(0, n_chunks, body, zero_acc, unroll=True)

    if not needs_edge:
        full_block()
    else:
        is_full = row0 + block_r <= rows

        @pl.when(is_full)
        def _full():
            full_block()

        # Only the single trailing partial block takes this path; ghost blocks
        # (row0 >= rows) skip both branches (their DMA index is clamped in the
        # index_map, so they never read out of bounds).
        @pl.when(jnp.logical_and(jnp.logical_not(is_full), row0 < rows))
        def _partial():
            n_valid = (rows - row0 + chunk_r - 1) // chunk_r

            def body(j, acc):
                base = aligned(j * chunk_r)
                loss = loss_chunk(base)
                rid = row0 + base + jax.lax.broadcasted_iota(
                    jnp.int32, loss.shape, 0)
                loss = jnp.where(rid < rows, loss, 0.0)
                return acc + reduce8(loss)

            out_ref[...] += jax.lax.fori_loop(0, n_valid, body, zero_acc)


def _focal_terms(p, t, alpha, gamma):
    """Elementwise focal loss in plain jnp (sub-128 tail / tiny inputs)."""
    p = p.astype(jnp.float32)
    t = t.astype(jnp.float32)
    log_p = jnp.maximum(jnp.log(p), -100.0)
    log_1mp = jnp.maximum(jnp.log(1.0 - p), -100.0)
    bce = -(t * log_p + (1.0 - t) * log_1mp)
    p_t = t * p + (1.0 - t) * (1.0 - p)
    af = t * alpha + (1.0 - t) * (1.0 - alpha)
    return af * (1.0 - p_t) ** gamma * bce


def focal_loss(pred, target, alpha=0.9, gamma=2.0, reduction="mean"):
    assert pred.shape == target.shape
    numel = pred.size
    flat_p = pred.reshape(-1)
    flat_t = target.reshape(-1)

    main = (numel // LANES) * LANES        # lane-aligned prefix -> Pallas kernel
    rows = main // LANES
    total = jnp.zeros((), jnp.float32)
    kernel_elems = 0

    if rows >= SUBLANES:
        chunk_r = CHUNK_R if rows >= CHUNK_R else (rows // SUBLANES) * SUBLANES
        itembytes = pred.dtype.itemsize + target.dtype.itemsize
        max_block_r = max(
            chunk_r, (BLOCK_IN_BYTES // (LANES * itembytes)) // chunk_r * chunk_r)
        block_r = min(max_block_r, (rows // chunk_r) * chunk_r)
        n_chunks = block_r // chunk_r
        num_blocks = pl.cdiv(rows, block_r)

        ncores = min(_num_tensorcores(), num_blocks)
        blocks_per_core = pl.cdiv(num_blocks, ncores)
        has_ghost = ncores * blocks_per_core > num_blocks
        has_partial = (rows % block_r) != 0
        needs_edge = has_ghost or has_partial

        if main == numel:
            # Free reshape of the full arrays: no pad, no slice, no extra HBM pass.
            p2d = flat_p.reshape(rows, LANES)
            t2d = flat_t.reshape(rows, LANES)
        else:
            # Rare (numel % 128 != 0): the prefix slice may materialize one copy.
            p2d = flat_p[:main].reshape(rows, LANES)
            t2d = flat_t[:main].reshape(rows, LANES)

        if has_ghost:
            in_map = lambda c, i: (jnp.minimum(c * blocks_per_core + i,
                                               num_blocks - 1), 0)
        else:
            in_map = lambda c, i: (c * blocks_per_core + i, 0)

        kernel = functools.partial(
            _focal_kernel, alpha=float(alpha), gamma=float(gamma), rows=rows,
            block_r=block_r, chunk_r=chunk_r, n_chunks=n_chunks,
            blocks_per_core=blocks_per_core, needs_edge=needs_edge)

        cost = pl.CostEstimate(
            flops=22 * rows * LANES,
            transcendentals=2 * rows * LANES,
            bytes_accessed=rows * LANES * itembytes
            + ncores * SUBLANES * LANES * 4)

        partials = pl.pallas_call(
            kernel,
            out_shape=jax.ShapeDtypeStruct((ncores * SUBLANES, LANES),
                                           jnp.float32),
            grid_spec=pltpu.PrefetchScalarGridSpec(
                num_scalar_prefetch=0,
                grid=(ncores, blocks_per_core),
                in_specs=[
                    pl.BlockSpec((block_r, LANES), in_map),
                    pl.BlockSpec((block_r, LANES), in_map),
                ],
                out_specs=pl.BlockSpec((SUBLANES, LANES), lambda c, i: (c, 0)),
            ),
            compiler_params=pltpu.CompilerParams(
                # Outer axis spreads blocks across both TensorCores on v7x;
                # it is size-1 (or sequential) on single-core chips.
                dimension_semantics=("parallel", "arbitrary"),
                vmem_limit_bytes=VMEM_LIMIT_BYTES,
            ),
            cost_estimate=cost,
        )(p2d, t2d)

        total = total + jnp.sum(partials)   # tiny (ncores*8, 128) reduce in XLA
        kernel_elems = main

    if kernel_elems < numel:
        # Sub-128 remainder (and tiny inputs): plain jnp, single pass, no pad.
        total = total + jnp.sum(
            _focal_terms(flat_p[kernel_elems:], flat_t[kernel_elems:],
                         alpha, gamma))

    if reduction == "mean":
        return total / jnp.float32(numel)
    # 'sum' and 'none' both return the accumulated scalar: the PyTorch module
    # applies a per-class .sum() before reduction, so 'none' is also a scalar.
    return total


def _focal_loss_ref(pred, target, alpha=0.9, gamma=2.0, reduction="mean"):
    p = pred.astype(jnp.float32)
    t = target.astype(jnp.float32)
    log_p = jnp.maximum(jnp.log(p), -100.0)
    log_1mp = jnp.maximum(jnp.log(1.0 - p), -100.0)
    bce = -(t * log_p + (1.0 - t) * log_1mp)
    p_t = t * p + (1.0 - t) * (1.0 - p)
    loss = (t * alpha + (1.0 - t) * (1.0 - alpha)) * (1.0 - p_t) ** gamma * bce
    total = jnp.sum(loss)
    return total / pred.size if reduction == "mean" else total


if __name__ == "__main__":
    key = jax.random.PRNGKey(0)
    loss_fn = jax.jit(
        lambda p, t: focal_loss(p, t, alpha=0.9, gamma=2.0, reduction="mean"))

    def run_case(shape, case_id):
        k1, k2 = jax.random.split(jax.random.fold_in(key, case_id))
        # pred: probabilities in (0, 1); target: soft labels in [0, 1]
        pred = jax.nn.sigmoid(jax.random.normal(k1, shape, jnp.float32))
        target = jax.random.uniform(k2, shape, jnp.float32)
        out = jax.block_until_ready(loss_fn(pred, target))
        ref = _focal_loss_ref(pred, target, alpha=0.9, gamma=2.0,
                              reduction="mean")
        assert jnp.allclose(out, ref, rtol=1e-3, atol=1e-6), (shape, out, ref)

    # Small, fully aligned case: single block, mask-free path.
    run_case((2, 4, 16, 16), 0)
    # Larger, unaligned case (numel % 128 != 0): multi-block grid, unrolled
    # sub-chunk loop, gated/masked trailing partial block, and jnp tail path.
    run_case((2, 3, 160, 161), 1)
    print("KERNEL_OK")
</pallas_src>

<mosaic_0001>
module attributes {stable_mosaic.version = 11 : i64} {
  func.func @_focal_kernel(%arg0: i32, %arg1: i32, %arg2: memref<16x128xf32, #tpu.memory_space<vmem>>, %arg3: memref<16x128xf32, #tpu.memory_space<vmem>>, %arg4: memref<8x128xf32, #tpu.memory_space<vmem>>) attributes {dimension_semantics = [#tpu.dimension_semantics<parallel>, #tpu.dimension_semantics<arbitrary>], iteration_bounds = array<i64: 1, 1>, scalar_prefetch = 0 : i64, scratch_operands = 0 : i64, tpu.core_type = #tpu.core_type<tc>, window_params = [{transform_indices = @transform_0, window_bounds = array<i64: 16, 128>}, {transform_indices = @transform_1, window_bounds = array<i64: 16, 128>}, {transform_indices = @transform_2, window_bounds = array<i64: 8, 128>}]} {
    %c0_i32 = arith.constant 0 : i32
    %0 = arith.cmpi eq, %arg1, %c0_i32 : i32
    %1 = arith.extui %0 : i1 to i32
    %c0_i32_0 = arith.constant 0 : i32
    %2 = arith.cmpi ne, %1, %c0_i32_0 : i32
    scf.if %2 {
      %cst_14 = arith.constant 0.000000e+00 : f32
      %40 = vector.broadcast %cst_14 : f32 to vector<8x128xf32>
      %c0_15 = arith.constant 0 : index
      %c0_16 = arith.constant 0 : index
      %41 = vector.load %arg4[%c0_15, %c0_16] : memref<8x128xf32, #tpu.memory_space<vmem>>, vector<8x128xf32>
      tpu.vector_store %arg4[%c0_15, %c0_16], %40 {strides = array<i32>} : memref<8x128xf32, #tpu.memory_space<vmem>>, vector<8x128xf32>,
    } else {
    }
    %cst = arith.constant 0.000000e+00 : f32
    %3 = vector.broadcast %cst : f32 to vector<8x128xf32>
    %c0 = arith.constant 0 : index
    %c0_1 = arith.constant 0 : index
    %4 = vector.load %arg4[%c0, %c0_1] : memref<8x128xf32, #tpu.memory_space<vmem>>, vector<8x128xf32>
    %c0_i32_2 = arith.constant 0 : i32
    %c16_i32 = arith.constant 16 : i32
    %5 = arith.muli %c0_i32_2, %c16_i32 : i32
    %6 = tpu.assume_multiple %5, 16 : i32
    %7 = arith.index_cast %6 : i32 to index
    %c0_3 = arith.constant 0 : index
    %8 = vector.load %arg2[%7, %c0_3] : memref<16x128xf32, #tpu.memory_space<vmem>>, vector<16x128xf32>
    %9 = arith.index_cast %6 : i32 to index
    %c0_4 = arith.constant 0 : index
    %10 = vector.load %arg3[%9, %c0_4] : memref<16x128xf32, #tpu.memory_space<vmem>>, vector<16x128xf32>
    %11 = math.log %8 : vector<16x128xf32>
    %cst_5 = arith.constant -1.000000e+02 : f32
    %12 = vector.broadcast %cst_5 : f32 to vector<16x128xf32>
    %13 = arith.maximumf %11, %12 : vector<16x128xf32>
    %cst_6 = arith.constant 1.000000e+00 : f32
    %14 = vector.broadcast %cst_6 : f32 to vector<16x128xf32>
    %15 = arith.subf %14, %8 : vector<16x128xf32>
    %16 = math.log %15 : vector<16x128xf32>
    %cst_7 = arith.constant -1.000000e+02 : f32
    %17 = vector.broadcast %cst_7 : f32 to vector<16x128xf32>
    %18 = arith.maximumf %16, %17 : vector<16x128xf32>
    %19 = arith.subf %13, %18 : vector<16x128xf32>
    %20 = arith.mulf %10, %19 : vector<16x128xf32>
    %21 = arith.addf %18, %20 : vector<16x128xf32>
    %cst_8 = arith.constant 0.000000e+00 : f32
    %22 = vector.broadcast %cst_8 : f32 to vector<16x128xf32>
    %23 = arith.subf %22, %21 : vector<16x128xf32>
    %24 = arith.mulf %8, %10 : vector<16x128xf32>
    %25 = arith.addf %8, %10 : vector<16x128xf32>
    %26 = arith.addf %24, %24 : vector<16x128xf32>
    %27 = arith.subf %25, %26 : vector<16x128xf32>
    %cst_9 = arith.constant 8.000000e-01 : f32
    %28 = vector.broadcast %cst_9 : f32 to vector<16x128xf32>
    %29 = arith.mulf %10, %28 : vector<16x128xf32>
    %cst_10 = arith.constant 1.000000e-01 : f32
    %30 = vector.broadcast %cst_10 : f32 to vector<16x128xf32>
    %31 = arith.addf %30, %29 : vector<16x128xf32>
    %32 = arith.mulf %27, %27 : vector<16x128xf32>
    %33 = arith.mulf %31, %32 : vector<16x128xf32>
    %34 = arith.mulf %33, %23 : vector<16x128xf32>
    %35 = vector.shape_cast %34 : vector<16x128xf32> to vector<2x8x128xf32>
    %cst_11 = arith.constant dense<0.000000e+00> : vector<8x128xf32>
    %36 = vector.multi_reduction <add>, %35, %cst_11 [0] : vector<2x8x128xf32> to vector<8x128xf32>
    %37 = arith.addf %3, %36 : vector<8x128xf32>
    %c1_i32 = arith.constant 1 : i32
    %38 = arith.addf %4, %37 : vector<8x128xf32>
    %c0_12 = arith.constant 0 : index
    %c0_13 = arith.constant 0 : index
    %39 = vector.load %arg4[%c0_12, %c0_13] : memref<8x128xf32, #tpu.memory_space<vmem>>, vector<8x128xf32>
    tpu.vector_store %arg4[%c0_12, %c0_13], %38 {strides = array<i32>} : memref<8x128xf32, #tpu.memory_space<vmem>>, vector<8x128xf32>,
    return
  }
  func.func @transform_0(%arg0: i32, %arg1: i32) -> (i32, i32) {
    %c1_i32 = arith.constant 1 : i32
    %0 = arith.muli %arg0, %c1_i32 : i32
    %1 = arith.addi %0, %arg1 : i32
    %c0_i32 = arith.constant 0 : i32
    %c0_i32_0 = arith.constant 0 : i32
    return %1, %c0_i32 : i32, i32
  }
  func.func @transform_1(%arg0: i32, %arg1: i32) -> (i32, i32) {
    %c1_i32 = arith.constant 1 : i32
    %0 = arith.muli %arg0, %c1_i32 : i32
    %1 = arith.addi %0, %arg1 : i32
    %c0_i32 = arith.constant 0 : i32
    %c0_i32_0 = arith.constant 0 : i32
    return %1, %c0_i32 : i32, i32
  }
  func.func @transform_2(%arg0: i32, %arg1: i32) -> (i32, i32) {
    %c0_i32 = arith.constant 0 : i32
    %c0_i32_0 = arith.constant 0 : i32
    return %arg0, %c0_i32 : i32, i32
  }
}

</mosaic_0001>

<llo_original>
// kernel: _lambda_.1
$region0: #{_lambda_.1}
  #allocation0 [shape = 'u32[]', space=smem, size = 0x4, offset = 0x4, fixed_abs, tag = 'smem constant byte address 0x4 - core index']
  #allocation1 [shape = 'u32[72,128]{1,0:T(1,128)}', space=vmem, size = 0x9000, scoped, tag = 'internal scratch']
  %s0 = inlined_call_operand.vmem [shape: f32[16,128], index: 0, kind: input, shape index: {}]
  %s1 = inlined_call_operand.vmem [shape: f32[16,128], index: 1, kind: input, shape index: {}]
  %s2 = inlined_call_operand.vmem [shape: f32[8,128], index: 2, kind: output, shape index: {}]
  %s3 = sld [smem:[#allocation0]]
  $region22: #{_lambda_.1} parent=0
    _
  %s5 = ssub.s32 1, %s3
  %s6 = scalar_select 0, %s5, %s3
  // Predicated region
  $region2: #{_lambda_.1} parent=0 // pred_check
    _
  $region3: #{_lambda_.1} parent=0 // pred_check_branch
    %8 = sbr.rel (0) target = $region5
  $region4: #{_lambda_.1} parent=0 // pred_region
    %s9 = sadd.s32 0, 0
    %s10 = smul.u32 2, %s9
    %p11 = scmp.lt.s32.totalorder %s10, 1
    %s12 = scalar_select %p11, %s10, 1
    %s13 = smul.addr %s12, 8
    %s14 = scalar_lea.vmem %s0, %s13
    %s15 = sadd.s32 0, 0
    %s16 = smul.u32 2, %s15
  $region5: #{_lambda_.1} parent=0 // pred_fallthru
    _
  // Predicated region
  $region6: #{_lambda_.1} parent=0 // pred_check
    _
  $region7: #{_lambda_.1} parent=0 // pred_check_branch
    %18 = sbr.rel (0) target = $region9
  $region8: #{_lambda_.1} parent=0 // pred_region
    %s19 = sadd.s32 0, 0
    %s20 = smul.u32 2, %s19
    %p21 = scmp.lt.s32.totalorder %s20, 1
    %s22 = scalar_select %p21, %s20, 1
    %s23 = smul.addr %s22, 8
    %s24 = scalar_lea.vmem %s1, %s23
    %s25 = sadd.s32 0, 0
    %s26 = smul.u32 2, %s25
  $region9: #{_lambda_.1} parent=0 // pred_fallthru
    _
  %s27 = sadd.s32 0, 0
  %s28 = smul.u32 2, %s27
  %p29 = scmp.lt.s32.totalorder %s28, 1
  %s30 = scalar_select %p29, %s28, 1
  %s31 = smul.addr %s30, 8
  %s32 = scalar_lea.vmem %s0, %s31
  %s33 = sadd.s32 0, 0
  %s34 = smul.u32 2, %s33
  %p35 = scmp.lt.s32.totalorder %s34, 1
  %s36 = scalar_select %p35, %s34, 1
  %s37 = smul.addr %s36, 8
  %s38 = scalar_lea.vmem %s1, %s37
  %s39 = sadd.s32 0, 0
  %s40 = smul.u32 2, %s39
  %p41 = scmp.lt.s32.totalorder %s40, 1
  %s42 = scalar_select %p41, %s40, 1
  %s43 = smul.addr %s42, 8
  %s44 = scalar_lea.vmem %s0, %s43
  %s45 = sadd.s32 0, 0
  %s46 = smul.u32 2, %s45
  %s47 = sadd.s32 0, 0
  %s48 = smul.u32 2, %s47
  %p49 = scmp.lt.s32.totalorder %s48, 1
  %s50 = scalar_select %p49, %s48, 1
  %s51 = smul.addr %s50, 8
  %s52 = scalar_lea.vmem %s1, %s51
  %s53 = sadd.s32 0, 0
  %s54 = smul.u32 2, %s53
  %p55 = scmp.eq.s32.totalorder 0, 0
  // Predicated region
  $region10: #{_lambda_.1} parent=0 // pred_check
    %p56 = pneg %p55
  $region11: #{_lambda_.1} parent=0 // pred_check_branch
    %58 = sbr.rel (%p56) target = $region13
  $region12: #{_lambda_.1} parent=0 // pred_region
    %59 = vst [vmem:[%s2] sm:$0xff] 0.0
  $region13: #{_lambda_.1} parent=0 // pred_fallthru
    _
  %v60 = vld [vmem:[%s2] sm:$0xff]
  %v61 = vld [vmem:[%s44] sm:$0xff]
  %v62 = vld [vmem:[%s44 + $0x8] sm:$0xff]
  %v63 = vld [vmem:[%s52] sm:$0xff]
  %v64 = vld [vmem:[%s52 + $0x8] sm:$0xff]
  %v65 = vlog2.pop %v61
  %v66 = vmul.f32 %v65, 0.6931472
  %v67 = vlog2.pop %v62
  %v68 = vmul.f32 %v67, 0.6931472
  %v69 = vmax.f32 %v66, -100.0
  %v70 = vmax.f32 %v68, -100.0
  %v71 = vsub.f32 1.0, %v61
  %v72 = vsub.f32 1.0, %v62
  %v73 = vlog2.pop %v71
  %v74 = vmul.f32 %v73, 0.6931472
  %v75 = vlog2.pop %v72
  %v76 = vmul.f32 %v75, 0.6931472
  %v77 = vmax.f32 %v74, -100.0
  %v78 = vmax.f32 %v76, -100.0
  %v79 = vsub.f32 %v69, %v77
  %v80 = vsub.f32 %v70, %v78
  %v81 = vmul.f32 %v63, %v79
  %v82 = vmul.f32 %v64, %v80
  %v83 = vadd.f32 %v77, %v81
  %v84 = vadd.f32 %v78, %v82
  %v85 = vsub.f32 0.0, %v83
  %v86 = vsub.f32 0.0, %v84
  %v87 = vmul.f32 %v61, %v63
  %v88 = vmul.f32 %v62, %v64
  %v89 = vadd.f32 %v61, %v63
  %v90 = vadd.f32 %v62, %v64
  %v91 = vadd.f32 %v87, %v87
  %v92 = vadd.f32 %v88, %v88
  %v93 = vsub.f32 %v89, %v91
  %v94 = vsub.f32 %v90, %v92
  %v95 = vmul.f32 %v63, 0.8
  %v96 = vmul.f32 %v64, 0.8
  %v97 = vadd.f32 %v95, 0.1
  %v98 = vadd.f32 %v96, 0.1
  %v99 = vmul.f32 %v93, %v93
  %v100 = vmul.f32 %v94, %v94
  %v101 = vmul.f32 %v97, %v99
  %v102 = vmul.f32 %v98, %v100
  %v103 = vmul.f32 %v101, %v85
  %v104 = vmul.f32 %v102, %v86
  %v105 = vadd.f32 %v103, %v104
  %v106 = vadd.f32 %v105, 0.0
  %v107 = vadd.f32 %v60, %v106
  %108 = vst [vmem:[%s2] sm:$0xff] %v107
  // Predicated region
  $region14: #{_lambda_.1} parent=0 // pred_check
    _
  $region15: #{_lambda_.1} parent=0 // pred_check_branch
    %110 = sbr.rel (0) target = $region17
  $region16: #{_lambda_.1} parent=0 // pred_region
    _
  $region17: #{_lambda_.1} parent=0 // pred_fallthru
    _
  // Predicated region
  $region18: #{_lambda_.1} parent=0 // pred_check
    _
  $region19: #{_lambda_.1} parent=0 // pred_check_branch
    %112 = sbr.rel (0) target = $region21
  $region20: #{_lambda_.1} parent=0 // pred_region
    _
  $region21: #{_lambda_.1} parent=0 // pred_fallthru
    _

</llo_original>
